<compile_context>
chip_gen: v5e
topology: v5e:2x2
jax: 0.10.0
libtpu: 0.0.40
codegen_flags: <defaults>
</compile_context>

<pallas_src>
import jax
import jax.numpy as jnp
from jax import lax
from jax.experimental import pallas as pl
from jax.experimental.pallas import tpu as pltpu


def qfunc_kernel(obs_ref, act_ref, w1o_ref, w1a_ref, b1_ref,
                 w2_ref, b2_ref, w3_ref, b3_ref, o_ref):
    # Layer 1 (concat fused): h1^T = W1_obs^T @ obs^T + W1_act^T @ act^T + b1
    # dot_general contracting the last dims (A @ B^T) -- standard MXU-friendly form.
    dn = (((1,), (1,)), ((), ()))
    h = lax.dot_general(w1o_ref[...], obs_ref[...], dn,
                        preferred_element_type=jnp.float32)
    h = h + lax.dot_general(w1a_ref[...], act_ref[...], dn,
                            preferred_element_type=jnp.float32)
    h = jnp.maximum(h + b1_ref[...], 0.0)                       # (H1, TB) f32, ReLU

    # Layer 2: h2^T = W2^T @ h1^T + b2
    h = jnp.dot(w2_ref[...], h.astype(w2_ref.dtype),
                preferred_element_type=jnp.float32)
    h = jnp.maximum(h + b2_ref[...], 0.0)                       # (H2, TB) f32, ReLU

    # Layer 3 (out_features == 1): VPU multiply + sublane (XLU) reduce -- no
    # nearly-empty N=1 systolic pass. Result is lane-dense (1, TB).
    q = jnp.sum(h * w3_ref[...], axis=0, keepdims=True) + b3_ref[...]
    o_ref[...] = q.reshape(1, 1, q.shape[-1]).astype(o_ref.dtype)


def mlp_q_function(obs, act, params, *, tile_b=512, compute_dtype=jnp.float32):
    """Pallas-backed forward of MLPQFunction. Returns q of shape [B]."""
    w1, b1, w2, b2, w3, b3 = params
    B, obs_dim = obs.shape
    act_dim = act.shape[-1]
    h1 = w1.shape[1]
    h2 = w2.shape[1]

    # Batch tiling: TILE_B a multiple of 128 keeps input sublane (x8) and
    # output lane (x128) constraints satisfied; ragged tail handled by padding
    # (padded rows are computed and sliced off -- harmless).
    tile_b = max(128, (int(tile_b) // 128) * 128)
    b_pad = pl.cdiv(B, 128) * 128
    tile_b = min(tile_b, b_pad)
    b_pad = pl.cdiv(b_pad, tile_b) * tile_b
    num_tiles = b_pad // tile_b

    if b_pad != B:
        obs = jnp.pad(obs, ((0, b_pad - B), (0, 0)))
        act = jnp.pad(act, ((0, b_pad - B), (0, 0)))

    cd = jnp.dtype(compute_dtype)
    obs_c = obs.astype(cd)
    act_c = act.astype(cd)
    # Split + transpose W1 so concat fuses into the kernel; transpose W2 so the
    # batch lives on lanes. Weights are tiny -> one-time wrapper plumbing.
    w1o = w1[:obs_dim, :].T.astype(cd)                  # (H1, obs_dim)
    w1a = w1[obs_dim:, :].T.astype(cd)                  # (H1, act_dim)
    w2t = w2.T.astype(cd)                               # (H2, H1)
    b1c = b1.reshape(h1, 1).astype(jnp.float32)         # (H1, 1)
    b2c = b2.reshape(h2, 1).astype(jnp.float32)         # (H2, 1)
    w3c = w3.reshape(h2, 1).astype(jnp.float32)         # (H2, 1)  (VPU path, keep f32)
    b3c = b3.reshape(1, 1).astype(jnp.float32)          # (1, 1)

    def const_spec(shape):
        # Weights/biases: full array as one block, constant index_map ->
        # fetched once, resident in VMEM across all batch tiles.
        return pl.BlockSpec(shape, lambda i: (0,) * len(shape))

    flops = 2 * B * ((obs_dim + act_dim) * h1 + h1 * h2 + h2)
    bytes_accessed = (
        b_pad * (obs_dim + act_dim) * cd.itemsize        # activations in
        + b_pad * 4                                      # q out
        + (w1o.size + w1a.size + w2t.size) * cd.itemsize # weights
        + (b1c.size + b2c.size + w3c.size + b3c.size) * 4)

    q = pl.pallas_call(
        qfunc_kernel,
        out_shape=jax.ShapeDtypeStruct((num_tiles, 1, tile_b), jnp.float32),
        grid_spec=pltpu.PrefetchScalarGridSpec(
            num_scalar_prefetch=0,
            grid=(num_tiles,),
            in_specs=[
                pl.BlockSpec((tile_b, obs_dim), lambda i: (i, 0)),   # obs tile
                pl.BlockSpec((tile_b, act_dim), lambda i: (i, 0)),   # act tile
                const_spec((h1, obs_dim)),                           # W1_obs^T
                const_spec((h1, act_dim)),                           # W1_act^T
                const_spec((h1, 1)),                                 # b1
                const_spec((h2, h1)),                                # W2^T
                const_spec((h2, 1)),                                 # b2
                const_spec((h2, 1)),                                 # w3
                const_spec((1, 1)),                                  # b3
            ],
            out_specs=pl.BlockSpec((1, 1, tile_b), lambda i: (i, 0, 0)),
        ),
        compiler_params=pltpu.CompilerParams(
            dimension_semantics=("parallel",),          # v7x: shard tiles over 2 TCs
            vmem_limit_bytes=32 * 1024 * 1024,          # far above need; fits v7x 64 MiB
        ),
        cost_estimate=pl.CostEstimate(
            flops=int(flops), transcendentals=0, bytes_accessed=int(bytes_accessed)),
    )(obs_c, act_c, w1o, w1a, b1c, w2t, b2c, w3c, b3c)

    return q.reshape(b_pad)[:B]                          # lane-dense slab -> [B]


def init_params(key, obs_dim, act_dim, hidden_sizes):
    """Deterministic synthetic init. Weight layout: [in, out]; bias: [1, out]."""
    sizes = [obs_dim + act_dim] + list(hidden_sizes) + [1]
    params = []
    for j in range(len(sizes) - 1):
        key, kw, kb = jax.random.split(key, 3)
        bound = 1.0 / jnp.sqrt(sizes[j])                 # mimic nn.Linear default range
        w = jax.random.uniform(kw, (sizes[j], sizes[j + 1]), jnp.float32, -bound, bound)
        b = jax.random.uniform(kb, (1, sizes[j + 1]), jnp.float32, -bound, bound)
        params += [w, b]
    return tuple(params)


def reference_forward(obs, act, params):
    """Pure-JAX reference (mirrors the PyTorch module)."""
    w1, b1, w2, b2, w3, b3 = params
    x = jnp.concatenate([obs, act], axis=-1)
    h = jnp.maximum(x @ w1 + b1, 0.0)
    h = jnp.maximum(h @ w2 + b2, 0.0)
    q = h @ w3 + b3
    return jnp.squeeze(q, -1)


if __name__ == "__main__":
    key = jax.random.PRNGKey(0)
    B, obs_dim, act_dim = 8, 12, 4
    hidden_sizes = (32, 32)                               # activation = ReLU

    key, k_obs, k_act, k_par = jax.random.split(key, 4)
    obs = jax.random.normal(k_obs, (B, obs_dim), jnp.float32)
    act = jax.random.normal(k_act, (B, act_dim), jnp.float32)
    params = init_params(k_par, obs_dim, act_dim, hidden_sizes)

    # TODO(synk): at production batch sizes, call this jitted with bf16
    # compute_dtype on v5e/v6e and stack multiple Q evaluations per call.
    q = jax.jit(mlp_q_function)(obs, act, params)
    jax.block_until_ready(q)

    q_ref = reference_forward(obs, act, params)
    assert q.shape == (B,)
    assert jnp.allclose(q, q_ref, atol=1e-5, rtol=1e-5)

    print("KERNEL_OK")
</pallas_src>

<mosaic_0001>
module attributes {stable_mosaic.version = 11 : i64} {
  func.func @qfunc_kernel(%arg0: i32, %arg1: memref<128x12xf32, #tpu.memory_space<vmem>>, %arg2: memref<128x4xf32, #tpu.memory_space<vmem>>, %arg3: memref<32x12xf32, #tpu.memory_space<vmem>>, %arg4: memref<32x4xf32, #tpu.memory_space<vmem>>, %arg5: memref<32x1xf32, #tpu.memory_space<vmem>>, %arg6: memref<32x32xf32, #tpu.memory_space<vmem>>, %arg7: memref<32x1xf32, #tpu.memory_space<vmem>>, %arg8: memref<32x1xf32, #tpu.memory_space<vmem>>, %arg9: memref<1x1xf32, #tpu.memory_space<vmem>>, %arg10: memref<1x1x128xf32, #tpu.memory_space<vmem>>) attributes {dimension_semantics = [#tpu.dimension_semantics<parallel>], iteration_bounds = array<i64: 1>, scalar_prefetch = 0 : i64, scratch_operands = 0 : i64, tpu.core_type = #tpu.core_type<tc>, window_params = [{transform_indices = @transform_0, window_bounds = array<i64: 128, 12>}, {transform_indices = @transform_1, window_bounds = array<i64: 128, 4>}, {pipeline_mode = #tpu.pipeline_mode<synchronous>, transform_indices = @transform_2, window_bounds = array<i64: 32, 12>}, {pipeline_mode = #tpu.pipeline_mode<synchronous>, transform_indices = @transform_3, window_bounds = array<i64: 32, 4>}, {pipeline_mode = #tpu.pipeline_mode<synchronous>, transform_indices = @transform_4, window_bounds = array<i64: 32, 1>}, {pipeline_mode = #tpu.pipeline_mode<synchronous>, transform_indices = @transform_5, window_bounds = array<i64: 32, 32>}, {pipeline_mode = #tpu.pipeline_mode<synchronous>, transform_indices = @transform_6, window_bounds = array<i64: 32, 1>}, {pipeline_mode = #tpu.pipeline_mode<synchronous>, transform_indices = @transform_7, window_bounds = array<i64: 32, 1>}, {pipeline_mode = #tpu.pipeline_mode<synchronous>, transform_indices = @transform_8, window_bounds = array<i64: 1, 1>}, {transform_indices = @transform_9, window_bounds = array<i64: 1, 1, 128>}]} {
    %c0 = arith.constant 0 : index
    %c0_0 = arith.constant 0 : index
    %0 = vector.load %arg3[%c0, %c0_0] : memref<32x12xf32, #tpu.memory_space<vmem>>, vector<32x12xf32>
    %c0_1 = arith.constant 0 : index
    %c0_2 = arith.constant 0 : index
    %1 = vector.load %arg1[%c0_1, %c0_2] : memref<128x12xf32, #tpu.memory_space<vmem>>, vector<128x12xf32>
    %cst = arith.constant dense<0.000000e+00> : vector<32x128xf32>
    %2 = tpu.matmul %0, %1, %cst {dimension_numbers = #tpu.dot_dimension_numbers<[1], [1], [0], [0], [0, 0, 1, 0], [], []>} : vector<32x12xf32>, vector<128x12xf32>, vector<32x128xf32> -> vector<32x128xf32>
    %c0_3 = arith.constant 0 : index
    %c0_4 = arith.constant 0 : index
    %3 = vector.load %arg4[%c0_3, %c0_4] : memref<32x4xf32, #tpu.memory_space<vmem>>, vector<32x4xf32>
    %c0_5 = arith.constant 0 : index
    %c0_6 = arith.constant 0 : index
    %4 = vector.load %arg2[%c0_5, %c0_6] : memref<128x4xf32, #tpu.memory_space<vmem>>, vector<128x4xf32>
    %cst_7 = arith.constant dense<0.000000e+00> : vector<32x128xf32>
    %5 = tpu.matmul %3, %4, %cst_7 {dimension_numbers = #tpu.dot_dimension_numbers<[1], [1], [0], [0], [0, 0, 1, 0], [], []>} : vector<32x4xf32>, vector<128x4xf32>, vector<32x128xf32> -> vector<32x128xf32>
    %6 = arith.addf %2, %5 : vector<32x128xf32>
    %c0_8 = arith.constant 0 : index
    %c0_9 = arith.constant 0 : index
    %7 = vector.load %arg5[%c0_8, %c0_9] : memref<32x1xf32, #tpu.memory_space<vmem>>, vector<32x1xf32>
    %8 = vector.broadcast %7 : vector<32x1xf32> to vector<32x128xf32>
    %9 = arith.addf %6, %8 : vector<32x128xf32>
    %cst_10 = arith.constant 0.000000e+00 : f32
    %10 = vector.broadcast %cst_10 : f32 to vector<32x128xf32>
    %11 = arith.maximumf %9, %10 : vector<32x128xf32>
    %c0_11 = arith.constant 0 : index
    %c0_12 = arith.constant 0 : index
    %12 = vector.load %arg6[%c0_11, %c0_12] : memref<32x32xf32, #tpu.memory_space<vmem>>, vector<32x32xf32>
    %cst_13 = arith.constant dense<0.000000e+00> : vector<32x128xf32>
    %13 = tpu.matmul %12, %11, %cst_13 {dimension_numbers = #tpu.dot_dimension_numbers<[1], [0], [0], [1], [0, 0, 1, 1], [], []>} : vector<32x32xf32>, vector<32x128xf32>, vector<32x128xf32> -> vector<32x128xf32>
    %c0_14 = arith.constant 0 : index
    %c0_15 = arith.constant 0 : index
    %14 = vector.load %arg7[%c0_14, %c0_15] : memref<32x1xf32, #tpu.memory_space<vmem>>, vector<32x1xf32>
    %15 = vector.broadcast %14 : vector<32x1xf32> to vector<32x128xf32>
    %16 = arith.addf %13, %15 : vector<32x128xf32>
    %cst_16 = arith.constant 0.000000e+00 : f32
    %17 = vector.broadcast %cst_16 : f32 to vector<32x128xf32>
    %18 = arith.maximumf %16, %17 : vector<32x128xf32>
    %c0_17 = arith.constant 0 : index
    %c0_18 = arith.constant 0 : index
    %19 = vector.load %arg8[%c0_17, %c0_18] : memref<32x1xf32, #tpu.memory_space<vmem>>, vector<32x1xf32>
    %20 = vector.broadcast %19 : vector<32x1xf32> to vector<32x128xf32>
    %21 = arith.mulf %18, %20 : vector<32x128xf32>
    %cst_19 = arith.constant dense<0.000000e+00> : vector<128xf32>
    %22 = vector.multi_reduction <add>, %21, %cst_19 [0] : vector<32x128xf32> to vector<128xf32>
    %23 = vector.shape_cast %22 : vector<128xf32> to vector<1x128xf32>
    %c0_20 = arith.constant 0 : index
    %c0_21 = arith.constant 0 : index
    %24 = vector.load %arg9[%c0_20, %c0_21] : memref<1x1xf32, #tpu.memory_space<vmem>>, vector<1x1xf32>
    %25 = vector.broadcast %24 : vector<1x1xf32> to vector<1x128xf32>
    %26 = arith.addf %23, %25 : vector<1x128xf32>
    %27 = vector.shape_cast %26 : vector<1x128xf32> to vector<1x1x128xf32>
    %c0_22 = arith.constant 0 : index
    %c0_23 = arith.constant 0 : index
    %c0_24 = arith.constant 0 : index
    %28 = vector.load %arg10[%c0_22, %c0_23, %c0_24] : memref<1x1x128xf32, #tpu.memory_space<vmem>>, vector<1x1x128xf32>
    tpu.vector_store %arg10[%c0_22, %c0_23, %c0_24], %27 {strides = array<i32>} : memref<1x1x128xf32, #tpu.memory_space<vmem>>, vector<1x1x128xf32>,
    return
  }
  func.func @transform_0(%arg0: i32) -> (i32, i32) {
    %c0_i32 = arith.constant 0 : i32
    %c0_i32_0 = arith.constant 0 : i32
    return %arg0, %c0_i32 : i32, i32
  }
  func.func @transform_1(%arg0: i32) -> (i32, i32) {
    %c0_i32 = arith.constant 0 : i32
    %c0_i32_0 = arith.constant 0 : i32
    return %arg0, %c0_i32 : i32, i32
  }
  func.func @transform_2(%arg0: i32) -> (i32, i32) {
    %c0_i32 = arith.constant 0 : i32
    %c0_i32_0 = arith.constant 0 : i32
    %c0_i32_1 = arith.constant 0 : i32
    return %c0_i32, %c0_i32_0 : i32, i32
  }
  func.func @transform_3(%arg0: i32) -> (i32, i32) {
    %c0_i32 = arith.constant 0 : i32
    %c0_i32_0 = arith.constant 0 : i32
    %c0_i32_1 = arith.constant 0 : i32
    return %c0_i32, %c0_i32_0 : i32, i32
  }
  func.func @transform_4(%arg0: i32) -> (i32, i32) {
    %c0_i32 = arith.constant 0 : i32
    %c0_i32_0 = arith.constant 0 : i32
    %c0_i32_1 = arith.constant 0 : i32
    return %c0_i32, %c0_i32_0 : i32, i32
  }
  func.func @transform_5(%arg0: i32) -> (i32, i32) {
    %c0_i32 = arith.constant 0 : i32
    %c0_i32_0 = arith.constant 0 : i32
    %c0_i32_1 = arith.constant 0 : i32
    return %c0_i32, %c0_i32_0 : i32, i32
  }
  func.func @transform_6(%arg0: i32) -> (i32, i32) {
    %c0_i32 = arith.constant 0 : i32
    %c0_i32_0 = arith.constant 0 : i32
    %c0_i32_1 = arith.constant 0 : i32
    return %c0_i32, %c0_i32_0 : i32, i32
  }
  func.func @transform_7(%arg0: i32) -> (i32, i32) {
    %c0_i32 = arith.constant 0 : i32
    %c0_i32_0 = arith.constant 0 : i32
    %c0_i32_1 = arith.constant 0 : i32
    return %c0_i32, %c0_i32_0 : i32, i32
  }
  func.func @transform_8(%arg0: i32) -> (i32, i32) {
    %c0_i32 = arith.constant 0 : i32
    %c0_i32_0 = arith.constant 0 : i32
    %c0_i32_1 = arith.constant 0 : i32
    return %c0_i32, %c0_i32_0 : i32, i32
  }
  func.func @transform_9(%arg0: i32) -> (i32, i32, i32) {
    %c0_i32 = arith.constant 0 : i32
    %c0_i32_0 = arith.constant 0 : i32
    %c0_i32_1 = arith.constant 0 : i32
    return %arg0, %c0_i32, %c0_i32_0 : i32, i32, i32
  }
}

</mosaic_0001>

<llo_original>
// kernel: mlp_q_function.1
$region0: #{mlp_q_function.1}
  #allocation0 [shape = 'u32[]', space=smem, size = 0x4, offset = 0x4, fixed_abs, tag = 'smem constant byte address 0x4 - core index']
  #allocation1 [shape = 'u32[72,128]{1,0:T(1,128)}', space=vmem, size = 0x9000, scoped, tag = 'internal scratch']
  #allocation2 [shape = 'f32[1,1]{1,0:T(1,128)S(1)}', space=vmem, size = 0x200, scoped, tag = 'scoped memory for mlp_q_function.1']
  %s0 = inlined_call_operand.vmem [shape: f32[128,12], index: 0, kind: input, shape index: {}]
  %s1 = inlined_call_operand.vmem [shape: f32[128,4], index: 1, kind: input, shape index: {}]
  %s2 = inlined_call_operand.vmem [shape: f32[32,12], index: 2, kind: input, shape index: {}]
  %s3 = inlined_call_operand.vmem [shape: f32[32,4], index: 3, kind: input, shape index: {}]
  %s4 = inlined_call_operand.vmem [shape: f32[32,1], index: 4, kind: input, shape index: {}]
  %s5 = inlined_call_operand.vmem [shape: f32[32,32], index: 5, kind: input, shape index: {}]
  %s6 = inlined_call_operand.vmem [shape: f32[32,1], index: 6, kind: input, shape index: {}]
  %s7 = inlined_call_operand.vmem [shape: f32[32,1], index: 7, kind: input, shape index: {}]
  %s8 = inlined_call_operand.<no memory space> [shape: f32[1,1], index: 8, kind: input, shape index: {}]
  %s9 = inlined_call_operand.vmem [shape: f32[1,1,128], index: 9, kind: output, shape index: {}]
  %s10 = sld [smem:[#allocation0]]
  $region46: #{mlp_q_function.1} parent=0
    _
  %s12 = ssub.s32 1, %s10
  %s13 = scalar_select 0, %s12, %s10
  %v14 = vstv %s8
  %15 = vst [vmem:[#allocation2] sm:$0x1] %v14
  // Predicated region
  $region2: #{mlp_q_function.1} parent=0 // pred_check
    _
  $region3: #{mlp_q_function.1} parent=0 // pred_check_branch
    %17 = sbr.rel (0) target = $region5
  $region4: #{mlp_q_function.1} parent=0 // pred_region
    _
  $region5: #{mlp_q_function.1} parent=0 // pred_fallthru
    _
  // Predicated region
  $region6: #{mlp_q_function.1} parent=0 // pred_check
    _
  $region7: #{mlp_q_function.1} parent=0 // pred_check_branch
    %19 = sbr.rel (0) target = $region9
  $region8: #{mlp_q_function.1} parent=0 // pred_region
    _
  $region9: #{mlp_q_function.1} parent=0 // pred_fallthru
    _
  // Predicated region
  $region10: #{mlp_q_function.1} parent=0 // pred_check
    _
  $region11: #{mlp_q_function.1} parent=0 // pred_check_branch
    %21 = sbr.rel (0) target = $region13
  $region12: #{mlp_q_function.1} parent=0 // pred_region
    _
  $region13: #{mlp_q_function.1} parent=0 // pred_fallthru
    _
  // Predicated region
  $region14: #{mlp_q_function.1} parent=0 // pred_check
    _
  $region15: #{mlp_q_function.1} parent=0 // pred_check_branch
    %23 = sbr.rel (0) target = $region17
  $region16: #{mlp_q_function.1} parent=0 // pred_region
    _
  $region17: #{mlp_q_function.1} parent=0 // pred_fallthru
    _
  // Predicated region
  $region18: #{mlp_q_function.1} parent=0 // pred_check
    _
  $region19: #{mlp_q_function.1} parent=0 // pred_check_branch
    %25 = sbr.rel (0) target = $region21
  $region20: #{mlp_q_function.1} parent=0 // pred_region
    _
  $region21: #{mlp_q_function.1} parent=0 // pred_fallthru
    _
  // Predicated region
  $region22: #{mlp_q_function.1} parent=0 // pred_check
    _
  $region23: #{mlp_q_function.1} parent=0 // pred_check_branch
    %27 = sbr.rel (0) target = $region25
  $region24: #{mlp_q_function.1} parent=0 // pred_region
    _
  $region25: #{mlp_q_function.1} parent=0 // pred_fallthru
    _
  // Predicated region
  $region26: #{mlp_q_function.1} parent=0 // pred_check
    _
  $region27: #{mlp_q_function.1} parent=0 // pred_check_branch
    %29 = sbr.rel (0) target = $region29
  $region28: #{mlp_q_function.1} parent=0 // pred_region
    _
  $region29: #{mlp_q_function.1} parent=0 // pred_fallthru
    _
  // Predicated region
  $region30: #{mlp_q_function.1} parent=0 // pred_check
    _
  $region31: #{mlp_q_function.1} parent=0 // pred_check_branch
    %31 = sbr.rel (0) target = $region33
  $region32: #{mlp_q_function.1} parent=0 // pred_region
    _
  $region33: #{mlp_q_function.1} parent=0 // pred_fallthru
    _
  // Predicated region
  $region34: #{mlp_q_function.1} parent=0 // pred_check
    _
  $region35: #{mlp_q_function.1} parent=0 // pred_check_branch
    %33 = sbr.rel (0) target = $region37
  $region36: #{mlp_q_function.1} parent=0 // pred_region
    _
  $region37: #{mlp_q_function.1} parent=0 // pred_fallthru
    _
  %v34 = vld [vmem:[%s2] sm:$0xff]
  %v35 = vld [vmem:[%s2 + $0x8] sm:$0xff]
  %v36 = vld [vmem:[%s2 + $0x10] sm:$0xff]
  %v37 = vld [vmem:[%s2 + $0x18] sm:$0xff]
  %v38 = vld [vmem:[%s0] sm:$0xff]
  %v39 = vld [vmem:[%s0 + $0x8] sm:$0xff]
  %v40 = vld [vmem:[%s0 + $0x10] sm:$0xff]
  %v41 = vld [vmem:[%s0 + $0x18] sm:$0xff]
  %v42 = vld [vmem:[%s0 + $0x20] sm:$0xff]
  %v43 = vld [vmem:[%s0 + $0x28] sm:$0xff]
  %v44 = vld [vmem:[%s0 + $0x30] sm:$0xff]
  %v45 = vld [vmem:[%s0 + $0x38] sm:$0xff]
  %v46 = vld [vmem:[%s0 + $0x40] sm:$0xff]
  %v47 = vld [vmem:[%s0 + $0x48] sm:$0xff]
  %v48 = vld [vmem:[%s0 + $0x50] sm:$0xff]
  %v49 = vld [vmem:[%s0 + $0x58] sm:$0xff]
  %v50 = vld [vmem:[%s0 + $0x60] sm:$0xff]
  %v51 = vld [vmem:[%s0 + $0x68] sm:$0xff]
  %v52 = vld [vmem:[%s0 + $0x70] sm:$0xff]
  %v53 = vld [vmem:[%s0 + $0x78] sm:$0xff]
  %v54 = vld [vmem:[%s3] sm:$0xff]
  %v55 = vld [vmem:[%s3 + $0x8] sm:$0xff]
  %v56 = vld [vmem:[%s3 + $0x10] sm:$0xff]
  %v57 = vld [vmem:[%s3 + $0x18] sm:$0xff]
  %v58 = vld [vmem:[%s1] sm:$0xff]
  %v59 = vld [vmem:[%s1 + $0x8] sm:$0xff]
  %v60 = vld [vmem:[%s1 + $0x10] sm:$0xff]
  %v61 = vld [vmem:[%s1 + $0x18] sm:$0xff]
  %v62 = vld [vmem:[%s1 + $0x20] sm:$0xff]
  %v63 = vld [vmem:[%s1 + $0x28] sm:$0xff]
  %v64 = vld [vmem:[%s1 + $0x30] sm:$0xff]
  %v65 = vld [vmem:[%s1 + $0x38] sm:$0xff]
  %v66 = vld [vmem:[%s1 + $0x40] sm:$0xff]
  %v67 = vld [vmem:[%s1 + $0x48] sm:$0xff]
  %v68 = vld [vmem:[%s1 + $0x50] sm:$0xff]
  %v69 = vld [vmem:[%s1 + $0x58] sm:$0xff]
  %v70 = vld [vmem:[%s1 + $0x60] sm:$0xff]
  %v71 = vld [vmem:[%s1 + $0x68] sm:$0xff]
  %v72 = vld [vmem:[%s1 + $0x70] sm:$0xff]
  %v73 = vld [vmem:[%s1 + $0x78] sm:$0xff]
  %vm74 = vcmask 31744
  %v76 = vsel %vm74, %v54, 0
  %v79 = vsel %vm74, %v55, 0
  %v82 = vsel %vm74, %v56, 0
  %v85 = vsel %vm74, %v57, 0
  %v88 = vsel %vm74, %v58, 0
  %v91 = vsel %vm74, %v59, 0
  %v94 = vsel %vm74, %v60, 0
  %v97 = vsel %vm74, %v61, 0
  %v100 = vsel %vm74, %v62, 0
  %v103 = vsel %vm74, %v63, 0
  %v106 = vsel %vm74, %v64, 0
  %v109 = vsel %vm74, %v65, 0
  %v112 = vsel %vm74, %v66, 0
  %v115 = vsel %vm74, %v67, 0
  %v118 = vsel %vm74, %v68, 0
  %v121 = vsel %vm74, %v69, 0
  %v124 = vsel %vm74, %v70, 0
  %v127 = vsel %vm74, %v71, 0
  %v130 = vsel %vm74, %v72, 0
  %v133 = vsel %vm74, %v73, 0
  %135 = vmatpush.xpose.msra.mxu0 %v133
  %136 = vmatpush.xpose.msra.mxu0 %v130
  %137 = vmatpush.xpose.msra.mxu0 %v127
  %138 = vmatpush.xpose.msra.mxu0 %v124
  %139 = vmatpush.xpose.msra.mxu0 %v121
  %140 = vmatpush.xpose.msra.mxu0 %v118
  %141 = vmatpush.xpose.msra.mxu0 %v115
  %142 = vmatpush.xpose.msra.mxu0 %v112
  %143 = vmatpush.xpose.msra.mxu0 %v109
  %144 = vmatpush.xpose.msra.mxu0 %v106
  %145 = vmatpush.xpose.msra.mxu0 %v103
  %146 = vmatpush.xpose.msra.mxu0 %v100
  %147 = vmatpush.xpose.msra.mxu0 %v97
  %148 = vmatpush.xpose.msra.mxu0 %v94
  %149 = vmatpush.xpose.msra.mxu0 %v91
  %150 = vmatpush.xpose.msra.mxu0 %v88
  %151 = vmatmul.f32.gmra.mxu0 %v76
  %v152 = vpop.f32.mrf.mxu0
  %v153 = vadd.f32 0.0, %v152
  %154 = vmatmul.f32.gmra.mxu0 %v79
  %v155 = vpop.f32.mrf.mxu0
  %v156 = vadd.f32 0.0, %v155
  %157 = vmatmul.f32.gmra.mxu0 %v82
  %v158 = vpop.f32.mrf.mxu0
  %v159 = vadd.f32 0.0, %v158
  %160 = vmatmul.f32.gmra.mxu0 %v85
  %v161 = vpop.f32.mrf.mxu0
  %v162 = vadd.f32 0.0, %v161
  %163 = vdwg.mxu0
  %vm164 = vcmask 97280
  %v166 = vsel %vm164, %v34, 0
  %v169 = vsel %vm164, %v35, 0
  %v172 = vsel %vm164, %v36, 0
  %v175 = vsel %vm164, %v37, 0
  %v178 = vsel %vm164, %v38, 0
  %v181 = vsel %vm164, %v39, 0
  %v184 = vsel %vm164, %v40, 0
  %v187 = vsel %vm164, %v41, 0
  %v190 = vsel %vm164, %v42, 0
  %v193 = vsel %vm164, %v43, 0
  %v196 = vsel %vm164, %v44, 0
  %v199 = vsel %vm164, %v45, 0
  %v202 = vsel %vm164, %v46, 0
  %v205 = vsel %vm164, %v47, 0
  %v208 = vsel %vm164, %v48, 0
  %v211 = vsel %vm164, %v49, 0
  %v214 = vsel %vm164, %v50, 0
  %v217 = vsel %vm164, %v51, 0
  %v220 = vsel %vm164, %v52, 0
  %v223 = vsel %vm164, %v53, 0
  %225 = vmatpush.xpose.msra.mxu0 %v223
  %226 = vmatpush.xpose.msra.mxu0 %v220
  %227 = vmatpush.xpose.msra.mxu0 %v217
  %228 = vmatpush.xpose.msra.mxu0 %v214
  %229 = vmatpush.xpose.msra.mxu0 %v211
  %230 = vmatpush.xpose.msra.mxu0 %v208
  %231 = vmatpush.xpose.msra.mxu0 %v205
  %232 = vmatpush.xpose.msra.mxu0 %v202
  %233 = vmatpush.xpose.msra.mxu0 %v199
  %234 = vmatpush.xpose.msra.mxu0 %v196
  %235 = vmatpush.xpose.msra.mxu0 %v193
  %236 = vmatpush.xpose.msra.mxu0 %v190
  %237 = vmatpush.xpose.msra.mxu0 %v187
  %238 = vmatpush.xpose.msra.mxu0 %v184
  %239 = vmatpush.xpose.msra.mxu0 %v181
  %240 = vmatpush.xpose.msra.mxu0 %v178
  %241 = vmatmul.f32.gmra.mxu0 %v166
  %v242 = vpop.f32.mrf.mxu0
  %v243 = vadd.f32 %v153, %v242
  %244 = vmatmul.f32.gmra.mxu0 %v169
  %v245 = vpop.f32.mrf.mxu0
  %v246 = vadd.f32 %v156, %v245
  %247 = vmatmul.f32.gmra.mxu0 %v172
  %v248 = vpop.f32.mrf.mxu0
  %v249 = vadd.f32 %v159, %v248
  %250 = vmatmul.f32.gmra.mxu0 %v175
  %v251 = vpop.f32.mrf.mxu0
  %v252 = vadd.f32 %v162, %v251
  %253 = vdwg.mxu0
  %v254 = vld [vmem:[%s4] sm:$0xff]
  %v255 = vld [vmem:[%s4 + $0x8] sm:$0xff]
  %v256 = vld [vmem:[%s4 + $0x10] sm:$0xff]
  %v257 = vld [vmem:[%s4 + $0x18] sm:$0xff]
  %259 = vset.pattern.permute.xlu0 0
  %260 = vperm.xlu0 %259, %v254
  %v261 = vpop.permute.xlu0 %260
  %264 = vset.pattern.permute.xlu0 0
  %265 = vperm.xlu0 %264, %v255
  %v266 = vpop.permute.xlu0 %265
  %269 = vset.pattern.permute.xlu0 0
  %270 = vperm.xlu0 %269, %v256
  %v271 = vpop.permute.xlu0 %270
  %274 = vset.pattern.permute.xlu0 0
  %275 = vperm.xlu0 %274, %v257
  %v276 = vpop.permute.xlu0 %275
  %v278 = vadd.f32 %v243, %v261
  %v279 = vadd.f32 %v246, %v266
  %v280 = vadd.f32 %v249, %v271
  %v281 = vadd.f32 %v252, %v276
  %v282 = vmax.f32 %v278, 0.0
  %v283 = vmax.f32 %v279, 0.0
  %v284 = vmax.f32 %v280, 0.0
  %v285 = vmax.f32 %v281, 0.0
  %v286 = vld [vmem:[%s5] sm:$0xff]
  %v287 = vld [vmem:[%s5 + $0x8] sm:$0xff]
  %v288 = vld [vmem:[%s5 + $0x10] sm:$0xff]
  %v289 = vld [vmem:[%s5 + $0x18] sm:$0xff]
  %v290 = vld [vmem:[%s6] sm:$0xff]
  %v291 = vld [vmem:[%s6 + $0x8] sm:$0xff]
  %v292 = vld [vmem:[%s6 + $0x10] sm:$0xff]
  %v293 = vld [vmem:[%s6 + $0x18] sm:$0xff]
  %295 = vset.pattern.permute.xlu0 0
  %296 = vperm.xlu0 %295, %v290
  %v297 = vpop.permute.xlu0 %296
  %300 = vset.pattern.permute.xlu0 0
  %301 = vperm.xlu0 %300, %v291
  %v302 = vpop.permute.xlu0 %301
  %305 = vset.pattern.permute.xlu0 0
  %306 = vperm.xlu0 %305, %v292
  %v307 = vpop.permute.xlu0 %306
  %310 = vset.pattern.permute.xlu0 0
  %311 = vperm.xlu0 %310, %v293
  %v312 = vpop.permute.xlu0 %311
  %vm314 = vcmask 261120
  %v316 = vsel %vm314, %v286, 0
  %v319 = vsel %vm314, %v287, 0
  %v322 = vsel %vm314, %v288, 0
  %v325 = vsel %vm314, %v289, 0
  %327 = vmatpush.msra.mxu0 0.0
  %328 = vmatpush.msra.mxu0 0.0
  %329 = vmatpush.msra.mxu0 0.0
  %330 = vmatpush.msra.mxu0 0.0
  %331 = vmatpush.msra.mxu0 0.0
  %332 = vmatpush.msra.mxu0 0.0
  %333 = vmatpush.msra.mxu0 0.0
  %334 = vmatpush.msra.mxu0 0.0
  %335 = vmatpush.msra.mxu0 0.0
  %336 = vmatpush.msra.mxu0 0.0
  %337 = vmatpush.msra.mxu0 0.0
  %338 = vmatpush.msra.mxu0 0.0
  %339 = vmatpush.msra.mxu0 %v285
  %340 = vmatpush.msra.mxu0 %v284
  %341 = vmatpush.msra.mxu0 %v283
  %342 = vmatpush.msra.mxu0 %v282
  %343 = vmatmul.f32.gmra.mxu0 %v316
  %v344 = vpop.f32.mrf.mxu0
  %v345 = vadd.f32 %v297, %v344
  %346 = vmatmul.f32.gmra.mxu0 %v319
  %v347 = vpop.f32.mrf.mxu0
  %v348 = vadd.f32 %v302, %v347
  %349 = vmatmul.f32.gmra.mxu0 %v322
  %v350 = vpop.f32.mrf.mxu0
  %v351 = vadd.f32 %v307, %v350
  %352 = vmatmul.f32.gmra.mxu0 %v325
  %v353 = vpop.f32.mrf.mxu0
  %v354 = vadd.f32 %v312, %v353
  %355 = vdwg.mxu0
  %v356 = vmax.f32 %v345, 0.0
  %v357 = vmax.f32 %v348, 0.0
  %v358 = vmax.f32 %v351, 0.0
  %v359 = vmax.f32 %v354, 0.0
  %v360 = vld [vmem:[%s7] sm:$0xff]
  %v361 = vld [vmem:[%s7 + $0x8] sm:$0xff]
  %v362 = vld [vmem:[%s7 + $0x10] sm:$0xff]
  %v363 = vld [vmem:[%s7 + $0x18] sm:$0xff]
  %365 = vset.pattern.permute.xlu0 0
  %366 = vperm.xlu0 %365, %v360
  %v367 = vpop.permute.xlu0 %366
  %370 = vset.pattern.permute.xlu0 0
  %371 = vperm.xlu0 %370, %v361
  %v372 = vpop.permute.xlu0 %371
  %375 = vset.pattern.permute.xlu0 0
  %376 = vperm.xlu0 %375, %v362
  %v377 = vpop.permute.xlu0 %376
  %380 = vset.pattern.permute.xlu0 0
  %381 = vperm.xlu0 %380, %v363
  %v382 = vpop.permute.xlu0 %381
  %v384 = vmul.f32 %v356, %v367
  %v385 = vmul.f32 %v357, %v372
  %v386 = vmul.f32 %v358, %v377
  %v387 = vmul.f32 %v359, %v382
  %v388 = vadd.f32 %v384, %v385
  %v389 = vadd.f32 %v388, %v386
  %v390 = vadd.f32 %v389, %v387
  %v391 = vrot.slane %v390, 4
  %v392 = vadd.f32 %v390, %v391
  %v393 = vrot.slane %v392, 2
  %v394 = vadd.f32 %v392, %v393
  %v395 = vrot.slane %v394, 1
  %v396 = vadd.f32 %v394, %v395
  %v397 = vld [vmem:[#allocation2] sm:$0x1]
  %399 = vset.pattern.permute.xlu0 0
  %400 = vperm.xlu0 %399, %v397
  %v401 = vpop.permute.xlu0 %400
  %v403 = vperm.slane %v401, 0
  %v404 = vadd.f32 %v396, %v403
  %405 = vst [vmem:[%s9] sm:$0x1] %v404
  // Predicated region
  $region38: #{mlp_q_function.1} parent=0 // pred_check
    _
  $region39: #{mlp_q_function.1} parent=0 // pred_check_branch
    %407 = sbr.rel (0) target = $region41
  $region40: #{mlp_q_function.1} parent=0 // pred_region
    _
  $region41: #{mlp_q_function.1} parent=0 // pred_fallthru
    _
  // Predicated region
  $region42: #{mlp_q_function.1} parent=0 // pred_check
    _
  $region43: #{mlp_q_function.1} parent=0 // pred_check_branch
    %409 = sbr.rel (0) target = $region45
  $region44: #{mlp_q_function.1} parent=0 // pred_region
    _
  $region45: #{mlp_q_function.1} parent=0 // pred_fallthru
    _

</llo_original>
